<compile_context>
chip_gen: v7x
topology: tpu7x:2x2x1
jax: 0.10.0
libtpu: 0.0.40
codegen_flags: <defaults>
</compile_context>

<pallas_src>
import functools

import jax
import jax.numpy as jnp
from jax.experimental import pallas as pl
from jax.experimental.pallas import tpu as pltpu


def _cdiv(a, b):
    return -(-a // b)


def _device_tiling():
    """(tb_target, td_target, vmem_limit_bytes) chosen per TPU generation."""
    try:
        kind = jax.devices()[0].device_kind.lower()
    except Exception:  # pragma: no cover - defensive
        kind = ""
    if any(tag in kind for tag in ("v4", "v5", "v6")):
        # 128 MiB physical VMEM: bigger tiles are free (fewer per-step overheads).
        # 2 inputs x 2 buffers x 1024*4096*4B = 64 MiB.
        return 1024, 4096, 80 * 1024 * 1024
    # v7x (64 MiB VMEM) and unknown parts: 2 x 2 x 512*4096*4B = 32 MiB.
    return 512, 4096, 48 * 1024 * 1024


def _contrastive_kernel(o1_ref, o2_ref, lbl_ref, out_ref, *row_refs,
                        margin, distance_meter, batch, feat, tb, td,
                        mask_rows, mask_cols):
    i = pl.program_id(0)           # batch tile (parallel)
    d = pl.program_id(1)           # feature tile (reduction, last axis)
    nd = pl.num_programs(1)

    # Fresh per-row accumulators at the start of each B tile's D sweep.
    @pl.when(d == 0)
    def _():
        for r in row_refs:
            r[...] = jnp.zeros_like(r)

    o1 = o1_ref[...].astype(jnp.float32)       # (tb, td)
    o2 = o2_ref[...].astype(jnp.float32)       # (tb, td)

    # Column-validity mask for the ragged last D tile (edge-block contents are
    # undefined, so they must be zeroed before accumulation).  (1, td) lane iota
    # broadcast against (tb, td); compiled in only when D % td != 0.
    if mask_cols:
        col = jax.lax.broadcasted_iota(jnp.int32, (1, td), 1) + d * td
        valid = col < feat                     # all-True except on the last tile
    else:
        valid = None

    if distance_meter == 'euclidian':
        # torch pairwise_distance adds eps to the difference before the norm.
        diff = o1 - o2 + 1e-6
        if valid is not None:
            diff = jnp.where(valid, diff, 0.0)
        row_refs[0][...] += jnp.sum(diff * diff, axis=1, keepdims=True)
    elif distance_meter == 'cosine':
        if valid is not None:
            o1 = jnp.where(valid, o1, 0.0)
            o2 = jnp.where(valid, o2, 0.0)
        row_refs[0][...] += jnp.sum(o1 * o2, axis=1, keepdims=True)
        row_refs[1][...] += jnp.sum(o1 * o1, axis=1, keepdims=True)
        row_refs[2][...] += jnp.sum(o2 * o2, axis=1, keepdims=True)
    elif distance_meter == 'manhattan':
        diff = jnp.abs(o1 - o2)
        if valid is not None:
            diff = jnp.where(valid, diff, 0.0)
        row_refs[0][...] += jnp.sum(diff, axis=1, keepdims=True)
    else:
        raise ValueError(f"unknown distance_meter: {distance_meter}")

    # Finalize this B tile's partial loss on the last D step.
    @pl.when(d == nd - 1)
    def _():
        lbl = lbl_ref[...].astype(jnp.float32)                 # (tb, 1)
        if distance_meter == 'euclidian':
            sq = row_refs[0][...]
            dist = jnp.sqrt(sq)                                # only for the hinge
            hinge = jnp.maximum(margin - dist, 0.0)
            per = (1.0 - lbl) * sq + lbl * hinge * hinge
        elif distance_meter == 'cosine':
            eps = 1e-8
            n1 = jnp.maximum(jnp.sqrt(row_refs[1][...]), eps)
            n2 = jnp.maximum(jnp.sqrt(row_refs[2][...]), eps)
            cos = row_refs[0][...] / (n1 * n2)                 # exact divide (tiny)
            dist = 1.0 - cos
            hinge = jnp.maximum(margin - dist, 0.0)
            per = (1.0 - lbl) * dist * dist + lbl * hinge * hinge
        else:  # manhattan
            dist = row_refs[0][...]
            hinge = jnp.maximum(margin - dist, 0.0)
            per = (1.0 - lbl) * dist * dist + lbl * hinge * hinge

        if mask_rows:
            # Zero the out-of-range rows of the (ragged) last B tile.
            row = jax.lax.broadcasted_iota(jnp.int32, (tb, 1), 0) + i * tb
            per = jnp.where(row < batch, per, 0.0)

        tile_sum = jnp.sum(per, axis=0, keepdims=True)         # (1, 1)
        out_ref[...] = jnp.broadcast_to(tile_sum, (8, 128))    # lane-dense splat


def contrastive_loss(output1, output2, label, *, margin=1.0,
                     distance_meter='euclidian',
                     tb_target=None, td_target=None):
    """Pallas implementation of ContrastiveLoss.forward.

    Args:
      output1: (B, D) embeddings (f32 or bf16).
      output2: (B, D) embeddings (same shape/dtype as output1).
      label:   (B,) binary labels (0 = same class, 1 = different class).
    Returns:
      scalar f32 loss (mean over the batch).
    """
    if distance_meter not in ('euclidian', 'cosine', 'manhattan'):
        raise ValueError(f"unknown distance_meter: {distance_meter}")
    assert output1.shape == output2.shape and output1.ndim == 2
    B, D = output1.shape

    dev_tb, dev_td, vmem_limit = _device_tiling()
    tb_target = dev_tb if tb_target is None else tb_target
    td_target = dev_td if td_target is None else td_target

    # Tile sizes: the full dim when it fits in one tile (no masking needed),
    # otherwise hardware-aligned tiles (tb % 8 == 0, td % 128 == 0) with
    # in-kernel masking of the ragged edge blocks.  No host-side padding.
    tb = B if B <= tb_target else tb_target
    td = D if D <= td_target else td_target
    nb = _cdiv(B, tb)
    nd = _cdiv(D, td)
    mask_rows = (B % tb) != 0
    mask_cols = (D % td) != 0

    lbl = jnp.reshape(label, (B, 1)).astype(jnp.float32)   # tiny (B elements)

    kernel = functools.partial(
        _contrastive_kernel,
        margin=float(margin), distance_meter=distance_meter,
        batch=B, feat=D, tb=tb, td=td,
        mask_rows=mask_rows, mask_cols=mask_cols)

    emb_spec = pl.BlockSpec((tb, td), lambda i, d: (i, d))
    lbl_spec = pl.BlockSpec((tb, 1), lambda i, d: (i, 0))   # one DMA per B tile
    out_spec = pl.BlockSpec((8, 128), lambda i, d: (i, 0))  # per-tile partial

    n_row_scratch = 3 if distance_meter == 'cosine' else 1
    itemsize = jnp.dtype(output1.dtype).itemsize
    flops = (6 if distance_meter == 'cosine' else 3) * B * D
    transcendentals = {'euclidian': B, 'cosine': 2 * B, 'manhattan': 0}[distance_meter]

    out = pl.pallas_call(
        kernel,
        out_shape=jax.ShapeDtypeStruct((nb * 8, 128), jnp.float32),
        grid=(nb, nd),
        in_specs=[emb_spec, emb_spec, lbl_spec],
        out_specs=out_spec,
        scratch_shapes=[pltpu.VMEM((tb, 1), jnp.float32)
                        for _ in range(n_row_scratch)],
        compiler_params=pltpu.CompilerParams(
            dimension_semantics=("parallel", "arbitrary"),
            vmem_limit_bytes=vmem_limit),
        cost_estimate=pl.CostEstimate(
            flops=flops,
            transcendentals=transcendentals,
            bytes_accessed=2 * B * D * itemsize + B * 4 + nb * 8 * 128 * 4),
    )(output1, output2, lbl)

    # Each B tile wrote its partial sum (splat over its (8,128) block).
    partials = out.reshape(nb, 8, 128)[:, 0, 0]
    return jnp.sum(partials) / jnp.float32(B)


if __name__ == "__main__":
    key = jax.random.PRNGKey(0)
    k1, k2, k3 = jax.random.split(key, 3)
    margin = 1.0

    def ref_loss(o1, o2, lbl, metric):
        o1 = o1.astype(jnp.float32)
        o2 = o2.astype(jnp.float32)
        if metric == 'euclidian':
            dist = jnp.sqrt(jnp.sum((o1 - o2 + 1e-6) ** 2, axis=1))
        elif metric == 'cosine':
            dot = jnp.sum(o1 * o2, axis=1)
            n1 = jnp.maximum(jnp.sqrt(jnp.sum(o1 * o1, axis=1)), 1e-8)
            n2 = jnp.maximum(jnp.sqrt(jnp.sum(o2 * o2, axis=1)), 1e-8)
            dist = 1.0 - dot / (n1 * n2)
        else:  # manhattan
            dist = jnp.sum(jnp.abs(o1 - o2), axis=1)
        hinge = jnp.maximum(margin - dist, 0.0)
        return jnp.mean((1.0 - lbl) * dist ** 2 + lbl * hinge ** 2)

    # Case 1: small aligned shapes -> single tile per input, no edge masking.
    B, D = 8, 32
    o1 = jax.random.normal(k1, (B, D), dtype=jnp.float32)
    o2 = jax.random.normal(k2, (B, D), dtype=jnp.float32)
    lbl = jax.random.bernoulli(k3, 0.5, (B,)).astype(jnp.float32)
    for metric in ('euclidian', 'cosine', 'manhattan'):
        got = jax.block_until_ready(
            contrastive_loss(o1, o2, lbl, margin=margin, distance_meter=metric))
        want = ref_loss(o1, o2, lbl, metric)
        assert jnp.allclose(got, want, rtol=1e-4, atol=1e-4), (metric, got, want)

    # Case 2: ragged B and D with small forced tiles -> exercises multi-tile
    # accumulation plus the in-kernel row / column edge masks (no padding).
    B2, D2 = 12, 320
    o1b = jax.random.normal(k1, (B2, D2), dtype=jnp.float32)
    o2b = jax.random.normal(k2, (B2, D2), dtype=jnp.float32)
    lblb = jax.random.bernoulli(k3, 0.5, (B2,)).astype(jnp.float32)
    for metric in ('euclidian', 'cosine', 'manhattan'):
        got = jax.block_until_ready(
            contrastive_loss(o1b, o2b, lblb, margin=margin, distance_meter=metric,
                             tb_target=8, td_target=128))
        want = ref_loss(o1b, o2b, lblb, metric)
        assert jnp.allclose(got, want, rtol=1e-4, atol=1e-4), (metric, got, want)

    print("KERNEL_OK")
</pallas_src>

<mosaic_0001>
module attributes {stable_mosaic.version = 11 : i64} {
  func.func @_contrastive_kernel(%arg0: i32, %arg1: i32, %arg2: memref<8x32xf32, #tpu.memory_space<vmem>>, %arg3: memref<8x32xf32, #tpu.memory_space<vmem>>, %arg4: memref<8x1xf32, #tpu.memory_space<vmem>>, %arg5: memref<8x128xf32, #tpu.memory_space<vmem>>, %arg6: memref<8x1xf32, #tpu.memory_space<vmem>>) attributes {dimension_semantics = [#tpu.dimension_semantics<parallel>, #tpu.dimension_semantics<arbitrary>], iteration_bounds = array<i64: 1, 1>, scalar_prefetch = 0 : i64, scratch_operands = 1 : i64, tpu.core_type = #tpu.core_type<tc>, window_params = [{transform_indices = @transform_0, window_bounds = array<i64: 8, 32>}, {transform_indices = @transform_1, window_bounds = array<i64: 8, 32>}, {transform_indices = @transform_2, window_bounds = array<i64: 8, 1>}, {transform_indices = @transform_3, window_bounds = array<i64: 8, 128>}]} {
    %c0_i32 = arith.constant 0 : i32
    %0 = arith.cmpi eq, %arg1, %c0_i32 : i32
    %1 = arith.extui %0 : i1 to i32
    %c0_i32_0 = arith.constant 0 : i32
    %2 = arith.cmpi ne, %1, %c0_i32_0 : i32
    scf.if %2 {
      %cst_11 = arith.constant 0.000000e+00 : f32
      %17 = vector.broadcast %cst_11 : f32 to vector<8x1xf32>
      %c0_12 = arith.constant 0 : index
      %c0_13 = arith.constant 0 : index
      %18 = vector.load %arg6[%c0_12, %c0_13] : memref<8x1xf32, #tpu.memory_space<vmem>>, vector<8x1xf32>
      tpu.vector_store %arg6[%c0_12, %c0_13], %17 {strides = array<i32>} : memref<8x1xf32, #tpu.memory_space<vmem>>, vector<8x1xf32>,
    } else {
    }
    %c0 = arith.constant 0 : index
    %c0_1 = arith.constant 0 : index
    %3 = vector.load %arg2[%c0, %c0_1] : memref<8x32xf32, #tpu.memory_space<vmem>>, vector<8x32xf32>
    %c0_2 = arith.constant 0 : index
    %c0_3 = arith.constant 0 : index
    %4 = vector.load %arg3[%c0_2, %c0_3] : memref<8x32xf32, #tpu.memory_space<vmem>>, vector<8x32xf32>
    %5 = arith.subf %3, %4 : vector<8x32xf32>
    %cst = arith.constant 9.99999997E-7 : f32
    %6 = vector.broadcast %cst : f32 to vector<8x32xf32>
    %7 = arith.addf %5, %6 : vector<8x32xf32>
    %c0_4 = arith.constant 0 : index
    %c0_5 = arith.constant 0 : index
    %8 = vector.load %arg6[%c0_4, %c0_5] : memref<8x1xf32, #tpu.memory_space<vmem>>, vector<8x1xf32>
    %9 = arith.mulf %7, %7 : vector<8x32xf32>
    %cst_6 = arith.constant dense<0.000000e+00> : vector<8xf32>
    %10 = vector.multi_reduction <add>, %9, %cst_6 [1] : vector<8x32xf32> to vector<8xf32>
    %11 = vector.shape_cast %10 : vector<8xf32> to vector<8x1xf32>
    %12 = arith.addf %8, %11 : vector<8x1xf32>
    %c0_7 = arith.constant 0 : index
    %c0_8 = arith.constant 0 : index
    %13 = vector.load %arg6[%c0_7, %c0_8] : memref<8x1xf32, #tpu.memory_space<vmem>>, vector<8x1xf32>
    tpu.vector_store %arg6[%c0_7, %c0_8], %12 {strides = array<i32>} : memref<8x1xf32, #tpu.memory_space<vmem>>, vector<8x1xf32>,
    %c0_i32_9 = arith.constant 0 : i32
    %14 = arith.cmpi eq, %arg1, %c0_i32_9 : i32
    %15 = arith.extui %14 : i1 to i32
    %c0_i32_10 = arith.constant 0 : i32
    %16 = arith.cmpi ne, %15, %c0_i32_10 : i32
    scf.if %16 {
      %c0_11 = arith.constant 0 : index
      %c0_12 = arith.constant 0 : index
      %17 = vector.load %arg4[%c0_11, %c0_12] : memref<8x1xf32, #tpu.memory_space<vmem>>, vector<8x1xf32>
      %c0_13 = arith.constant 0 : index
      %c0_14 = arith.constant 0 : index
      %18 = vector.load %arg6[%c0_13, %c0_14] : memref<8x1xf32, #tpu.memory_space<vmem>>, vector<8x1xf32>
      %19 = math.sqrt %18 : vector<8x1xf32>
      %cst_15 = arith.constant 1.000000e+00 : f32
      %20 = vector.broadcast %cst_15 : f32 to vector<8x1xf32>
      %21 = arith.subf %20, %19 : vector<8x1xf32>
      %cst_16 = arith.constant 0.000000e+00 : f32
      %22 = vector.broadcast %cst_16 : f32 to vector<8x1xf32>
      %23 = arith.maximumf %21, %22 : vector<8x1xf32>
      %cst_17 = arith.constant 1.000000e+00 : f32
      %24 = vector.broadcast %cst_17 : f32 to vector<8x1xf32>
      %25 = arith.subf %24, %17 : vector<8x1xf32>
      %26 = arith.mulf %25, %18 : vector<8x1xf32>
      %27 = arith.mulf %17, %23 : vector<8x1xf32>
      %28 = arith.mulf %27, %23 : vector<8x1xf32>
      %29 = arith.addf %26, %28 : vector<8x1xf32>
      %cst_18 = arith.constant dense<0.000000e+00> : vector<1xf32>
      %30 = vector.multi_reduction <add>, %29, %cst_18 [0] : vector<8x1xf32> to vector<1xf32>
      %31 = vector.shape_cast %30 : vector<1xf32> to vector<1x1xf32>
      %32 = vector.shape_cast %31 : vector<1x1xf32> to vector<1x1xf32>
      %33 = vector.broadcast %32 : vector<1x1xf32> to vector<8x128xf32>
      %c0_19 = arith.constant 0 : index
      %c0_20 = arith.constant 0 : index
      %34 = vector.load %arg5[%c0_19, %c0_20] : memref<8x128xf32, #tpu.memory_space<vmem>>, vector<8x128xf32>
      tpu.vector_store %arg5[%c0_19, %c0_20], %33 {strides = array<i32>} : memref<8x128xf32, #tpu.memory_space<vmem>>, vector<8x128xf32>,
    } else {
    }
    return
  }
  func.func @transform_0(%arg0: i32, %arg1: i32) -> (i32, i32) {
    %c0_i32 = arith.constant 0 : i32
    return %arg0, %arg1 : i32, i32
  }
  func.func @transform_1(%arg0: i32, %arg1: i32) -> (i32, i32) {
    %c0_i32 = arith.constant 0 : i32
    return %arg0, %arg1 : i32, i32
  }
  func.func @transform_2(%arg0: i32, %arg1: i32) -> (i32, i32) {
    %c0_i32 = arith.constant 0 : i32
    %c0_i32_0 = arith.constant 0 : i32
    return %arg0, %c0_i32 : i32, i32
  }
  func.func @transform_3(%arg0: i32, %arg1: i32) -> (i32, i32) {
    %c0_i32 = arith.constant 0 : i32
    %c0_i32_0 = arith.constant 0 : i32
    return %arg0, %c0_i32 : i32, i32
  }
}

</mosaic_0001>

<llo_original>
// kernel: tpu_custom_call.1
$region0: #{tpu_custom_call.1}
  #allocation0 [shape = 'u32[]', space=smem, size = 0x4, offset = 0x4, fixed_abs, tag = 'smem constant byte address 0x4 - core index']
  #allocation1 [shape = 'u32[144,128]{1,0:T(1,128)}', space=vmem, size = 0x12000, scoped, tag = 'internal scratch']
  #allocation2 [shape = 'f32[8,1]{1,0:T(8,128)}', space=vmem, size = 0x1000, scoped, tag = 'scratch operand']
  %s0 = inlined_call_operand.vmem [shape: f32[8,32], index: 0, kind: input, shape index: {}]
  %s1 = inlined_call_operand.hbm [shape: f32[8,32], index: 1, kind: input, shape index: {}]
  %s2 = inlined_call_operand.vmem [shape: f32[8,1], index: 2, kind: input, shape index: {}]
  %s3 = inlined_call_operand.hbm [shape: f32[8,128], index: 3, kind: output, shape index: {}]
  %s4 = sld [smem:[#allocation0]]
  $region34: #{tpu_custom_call.1} parent=0
    _
  %s6 = ssub.s32 1, %s4
  %s7 = scalar_select 0, %s6, %s4
  $region1: #{tpu_custom_call.1} parent=0
    #allocation3 [shape = 'u8[4096]{0}', space=vmem, size = 0x1000, scoped, tag = 'input window, operand 1, single buffered']
    #allocation4 [shape = 's32[1]{0}', space=sflag, size = 0x4, scoped, tag = 'scoped memory for tpu_custom_call.1']
    #allocation5 [shape = 's32[1]{0}', space=sflag, size = 0x4, scoped, tag = 'scoped memory for tpu_custom_call.1']
    #allocation6 [shape = 'u8[4096]{0}', space=vmem, size = 0x1000, scoped, tag = 'output window, operand 0, single buffered']
    %8 = vsyncpa [#allocation4], 0
    %9 = vsyncpa [#allocation5], 0
    // Predicated region
    $region2: #{tpu_custom_call.1} parent=1 // pred_check
      _
    $region3: #{tpu_custom_call.1} parent=1 // pred_check_branch
      %11 = sbr.rel (0) target = $region5
    $region4: #{tpu_custom_call.1} parent=1 // pred_region
      _
    $region5: #{tpu_custom_call.1} parent=1 // pred_fallthru
      _
    // Predicated region
    $region6: #{tpu_custom_call.1} parent=1 // pred_check
      _
    $region7: #{tpu_custom_call.1} parent=1 // pred_check_branch
      %13 = sbr.rel (0) target = $region9
    $region8: #{tpu_custom_call.1} parent=1 // pred_region
      %s15 = ssub.s32 128, 128
      %16 = vsyncadd [#allocation4], %s15
      %s18 = sshll.u32 [#allocation3], 4
      %s19 = int_to_ptr.vmem [resolvable:$true] %s18
      %21 = dma.hbm_to_vmem [thread:$0]  %s1, 128, %s19, [#allocation4]
    $region9: #{tpu_custom_call.1} parent=1 // pred_fallthru
      _
    // Predicated region
    $region10: #{tpu_custom_call.1} parent=1 // pred_check
      _
    $region11: #{tpu_custom_call.1} parent=1 // pred_check_branch
      %23 = sbr.rel (0) target = $region13
    $region12: #{tpu_custom_call.1} parent=1 // pred_region
      _
    $region13: #{tpu_custom_call.1} parent=1 // pred_fallthru
      _
    // Predicated region
    $region14: #{tpu_custom_call.1} parent=1 // pred_check
      _
    $region15: #{tpu_custom_call.1} parent=1 // pred_check_branch
      %25 = sbr.rel (0) target = $region17
    $region16: #{tpu_custom_call.1} parent=1 // pred_region
      %26 = dma.done [#allocation4], 128
    $region17: #{tpu_custom_call.1} parent=1 // pred_fallthru
      _
    %p27 = scmp.eq.s32.totalorder 0, 0
    // Predicated region
    $region18: #{tpu_custom_call.1} parent=1 // pred_check
      %p28 = pneg %p27
    $region19: #{tpu_custom_call.1} parent=1 // pred_check_branch
      %30 = sbr.rel (%p28) target = $region21
    $region20: #{tpu_custom_call.1} parent=1 // pred_region
      %vm31 = vcmask 7168
      %32 = vst.msk [vmem:[#allocation2] sm:$0xff] %vm31, 0.0
    $region21: #{tpu_custom_call.1} parent=1 // pred_fallthru
      _
    %v33 = vld [vmem:[%s0] sm:$0xff]
    %v34 = vld [vmem:[#allocation3] sm:$0xff]
    %v35 = vsub.f32 %v33, %v34
    %v36 = vadd.f32 %v35, 1e-06
    %v37 = vld [vmem:[#allocation2] sm:$0xff]
    %v38 = vmul.f32 %v36, %v36
    %vm39 = vcmask 261120
    %v40 = vsel %vm39, %v38, 0.0
    %41 = vadd.xlane.f32.xlu0 %v40
    %v42 = vpop.xlane.xlu0 %41
    %v43 = vadd.f32 %v37, %v42
    %vm44 = vcmask 7168
    %45 = vst.msk [vmem:[#allocation2] sm:$0xff] %vm44, %v43
    // Predicated region
    $region22: #{tpu_custom_call.1} parent=1 // pred_check
      %p46 = pneg %p27
    $region23: #{tpu_custom_call.1} parent=1 // pred_check_branch
      %48 = sbr.rel (%p46) target = $region25
    $region24: #{tpu_custom_call.1} parent=1 // pred_region
      %v49 = vld [vmem:[%s2] sm:$0xff]
      %v50 = vld [vmem:[#allocation2] sm:$0xff]
      %v51 = vrsqrt.pop %v50
      %v52 = vmul.f32 %v50, %v51
      %vm53 = vcmp.eq.f32.partialorder %v50, inf
      %v54 = vsel %vm53, %v50, %v52
      %vm55 = vcmp.eq.f32.partialorder %v50, 0.0
      %v56 = vand.u32 %v50, 2147483648
      %v57 = vsel %vm55, %v56, %v54
      %v58 = vsub.f32 1.0, %v57
      %v59 = vmax.f32 %v58, 0.0
      %v60 = vsub.f32 1.0, %v49
      %v61 = vmul.f32 %v60, %v50
      %v62 = vmul.f32 %v49, %v59
      %v63 = vmul.f32 %v62, %v59
      %v64 = vadd.f32 %v61, %v63
      %v65 = vsel %vm44, %v64, 0.0
      %v66 = vrot.slane %v65, 4
      %v67 = vadd.f32 %v65, %v66
      %v68 = vrot.slane %v67, 2
      %v69 = vadd.f32 %v67, %v68
      %v70 = vrot.slane %v69, 1
      %v71 = vadd.f32 %v69, %v70
      %73 = vset.pattern.permute.xlu0 0
      %74 = vperm.xlu0 %73, %v71
      %v75 = vpop.permute.xlu0 %74
      %77 = vst [vmem:[#allocation6] sm:$0xff] %v75
    $region25: #{tpu_custom_call.1} parent=1 // pred_fallthru
      _
    // Predicated region
    $region26: #{tpu_custom_call.1} parent=1 // pred_check
      _
    $region27: #{tpu_custom_call.1} parent=1 // pred_check_branch
      %79 = sbr.rel (0) target = $region29
    $region28: #{tpu_custom_call.1} parent=1 // pred_region
      %s81 = ssub.s32 128, 128
      %82 = vsyncadd [#allocation5], %s81
      %s84 = sshll.u32 [#allocation6], 4
      %s85 = int_to_ptr.vmem [resolvable:$true] %s84
      %87 = dma.vmem_to_hbm [thread:$0]  %s85, 128, %s3, [#allocation5]
    $region29: #{tpu_custom_call.1} parent=1 // pred_fallthru
      _
    // Predicated region
    $region30: #{tpu_custom_call.1} parent=1 // pred_check
      _
    $region31: #{tpu_custom_call.1} parent=1 // pred_check_branch
      %89 = sbr.rel (0) target = $region33
    $region32: #{tpu_custom_call.1} parent=1 // pred_region
      %90 = dma.done [#allocation5], 128
    $region33: #{tpu_custom_call.1} parent=1 // pred_fallthru
      _
    %91 = vsyncpa [#allocation4], 1
    %92 = vsyncpa [#allocation5], 1

</llo_original>
